<compile_context>
chip_gen: v5e
topology: v5e:2x2
jax: 0.10.0
libtpu: 0.0.40
codegen_flags: <defaults>
</compile_context>

<pallas_src>
import functools

import jax
import jax.numpy as jnp
from jax import lax
from jax.experimental import pallas as pl
from jax.experimental.pallas import tpu as pltpu

_LANES = 128
_SUBLANES = 8
_CHUNK = 256          # rows per inner compute sub-chunk (32 f32 vregs / input)
_TM_MAX = 4096        # rows per DMA tile: 4096x128 f32 = 2 MiB per input buffer


def _fold(v, nrows):
    # (nrows, 128) -> (8, 128); layout-compatible reshape, vreg-wise adds only.
    return jnp.sum(v.reshape(nrows // _SUBLANES, _SUBLANES, _LANES), axis=0)


def _process(yp_ref, yt_ref, out_ref, nrows):
    """Accumulate dice partial sums over the first `nrows` (static) rows."""

    def accum(r0, cn):
        yp = yp_ref[pl.ds(r0, cn), :].astype(jnp.float32)
        yt = yt_ref[pl.ds(r0, cn), :].astype(jnp.float32)
        # sigmoid(x) = 0.5 * (tanh(x / 2) + 1): single EUP push per vreg.
        yp = 0.5 * (jnp.tanh(0.5 * yp) + 1.0)
        out_ref[0] += _fold(yp * yt, cn)          # intersection partials
        out_ref[1] += _fold(yp + yt, cn)          # sum(y_pred) + sum(y_true)

    n_chunks, rem = divmod(nrows, _CHUNK)
    if n_chunks:
        def body(c, carry):
            accum(pl.multiple_of(c * _CHUNK, _CHUNK), _CHUNK)
            return carry
        lax.fori_loop(0, n_chunks, body, 0, unroll=True)
    if rem:
        accum(n_chunks * _CHUNK, rem)


def _dice_partials_kernel(tm, last_rows, yp_ref, yt_ref, out_ref):
    i = pl.program_id(0)

    @pl.when(i == 0)
    def _():
        out_ref[...] = jnp.zeros_like(out_ref)

    if last_rows == tm:
        # Every block is full: single unmasked fast path, no branching.
        _process(yp_ref, yt_ref, out_ref, tm)
    else:
        last = pl.num_programs(0) - 1

        @pl.when(i != last)
        def _():
            _process(yp_ref, yt_ref, out_ref, tm)

        @pl.when(i == last)
        def _():
            # Partial last block: only the DMA'd (valid) rows are read, so no
            # mask is needed.  `last_rows` is a trace-time multiple of 8.
            _process(yp_ref, yt_ref, out_ref, last_rows)


def dice_loss(y_pred, y_true, *, smooth=1.0):
    assert y_pred.shape == y_true.shape
    n_elem = int(y_pred.size)

    flat_pred = jnp.reshape(y_pred, (-1,))
    flat_true = jnp.reshape(y_true, (-1,))

    tile_elems = _SUBLANES * _LANES            # 1024
    n_main = (n_elem // tile_elems) * tile_elems

    intersection = jnp.zeros((), jnp.float32)
    pred_plus_true = jnp.zeros((), jnp.float32)

    if n_main:
        rows = n_main // _LANES                # multiple of 8
        if n_main == n_elem:
            yp2 = jnp.reshape(flat_pred, (rows, _LANES))   # free bitcast
            yt2 = jnp.reshape(flat_true, (rows, _LANES))
        else:
            # Aligned prefix only; avoids the old full-array jnp.pad round trip.
            yp2 = jnp.reshape(flat_pred[:n_main], (rows, _LANES))
            yt2 = jnp.reshape(flat_true[:n_main], (rows, _LANES))

        tm = rows if rows <= _TM_MAX else _TM_MAX
        total_blocks = pl.cdiv(rows, tm)
        last_rows = rows - (total_blocks - 1) * tm   # in [8, tm], multiple of 8

        kernel = functools.partial(_dice_partials_kernel, tm, last_rows)
        partials = pl.pallas_call(
            kernel,
            out_shape=jax.ShapeDtypeStruct((2, _SUBLANES, _LANES), jnp.float32),
            grid_spec=pltpu.PrefetchScalarGridSpec(
                num_scalar_prefetch=0,
                grid=(total_blocks,),
                in_specs=[
                    pl.BlockSpec((tm, _LANES), lambda i: (i, 0)),
                    pl.BlockSpec((tm, _LANES), lambda i: (i, 0)),
                ],
                out_specs=pl.BlockSpec((2, _SUBLANES, _LANES),
                                       lambda i: (0, 0, 0)),
            ),
            compiler_params=pltpu.CompilerParams(
                dimension_semantics=("arbitrary",),
                vmem_limit_bytes=32 * 1024 * 1024,
            ),
        )(yp2, yt2)

        intersection = intersection + jnp.sum(partials[0])
        pred_plus_true = pred_plus_true + jnp.sum(partials[1])

    if n_main != n_elem:
        # Ragged tail (< 1024 elements): tiny pure-JAX reduction.
        yp_t = jax.nn.sigmoid(flat_pred[n_main:].astype(jnp.float32))
        yt_t = flat_true[n_main:].astype(jnp.float32)
        intersection = intersection + jnp.sum(yp_t * yt_t)
        pred_plus_true = pred_plus_true + jnp.sum(yp_t) + jnp.sum(yt_t)

    return 1.0 - (2.0 * intersection + smooth) / (pred_plus_true + smooth)


def _dice_loss_ref(y_pred, y_true):
    smooth = 1.0
    yp = jax.nn.sigmoid(y_pred.astype(jnp.float32))
    yt = y_true.astype(jnp.float32)
    inter = jnp.sum(yp * yt)
    return 1.0 - (2.0 * inter + smooth) / (jnp.sum(yp) + jnp.sum(yt) + smooth)


if __name__ == "__main__":
    key = jax.random.PRNGKey(0)

    # 1) Small aligned NCHW logits / binary targets (single full block).
    k1, k2, k3, k4, k5, k6 = jax.random.split(key, 6)
    y_pred = jax.random.normal(k1, (2, 4, 16, 16), dtype=jnp.float32)
    y_true = (jax.random.uniform(k2, (2, 4, 16, 16)) > 0.5).astype(jnp.float32)
    loss = jax.block_until_ready(jax.jit(dice_loss)(y_pred, y_true))
    ref = jax.block_until_ready(_dice_loss_ref(y_pred, y_true))
    assert jnp.allclose(loss, ref, rtol=1e-4, atol=1e-5), (loss, ref)

    # 2) Ragged element count (exercises the aligned-prefix + JAX-tail path).
    yp_r = jax.random.normal(k3, (3, 5, 17, 13), dtype=jnp.float32)
    yt_r = (jax.random.uniform(k4, (3, 5, 17, 13)) > 0.5).astype(jnp.float32)
    loss_r = jax.block_until_ready(jax.jit(dice_loss)(yp_r, yt_r))
    ref_r = jax.block_until_ready(_dice_loss_ref(yp_r, yt_r))
    assert jnp.allclose(loss_r, ref_r, rtol=1e-4, atol=1e-5), (loss_r, ref_r)

    # 3) Multi-block input with a partial last block (exercises the chunked
    #    fori_loop and the static partial-block slice).
    yp_b = jax.random.normal(k5, (4, 8, 128, 160), dtype=jnp.float32)
    yt_b = (jax.random.uniform(k6, (4, 8, 128, 160)) > 0.5).astype(jnp.float32)
    loss_b = jax.block_until_ready(jax.jit(dice_loss)(yp_b, yt_b))
    ref_b = jax.block_until_ready(_dice_loss_ref(yp_b, yt_b))
    assert jnp.allclose(loss_b, ref_b, rtol=1e-4, atol=1e-5), (loss_b, ref_b)

    print("KERNEL_OK")
</pallas_src>

<mosaic_0001>
module attributes {stable_mosaic.version = 11 : i64} {
  func.func @_dice_partials_kernel(%arg0: i32, %arg1: memref<16x128xf32, #tpu.memory_space<vmem>>, %arg2: memref<16x128xf32, #tpu.memory_space<vmem>>, %arg3: memref<2x8x128xf32, #tpu.memory_space<vmem>>) attributes {dimension_semantics = [#tpu.dimension_semantics<arbitrary>], iteration_bounds = array<i64: 1>, scalar_prefetch = 0 : i64, scratch_operands = 0 : i64, tpu.core_type = #tpu.core_type<tc>, window_params = [{transform_indices = @transform_0, window_bounds = array<i64: 16, 128>}, {transform_indices = @transform_1, window_bounds = array<i64: 16, 128>}, {pipeline_mode = #tpu.pipeline_mode<synchronous>, transform_indices = @transform_2, window_bounds = array<i64: 2, 8, 128>}]} {
    %c0_i32 = arith.constant 0 : i32
    %0 = arith.cmpi eq, %arg0, %c0_i32 : i32
    %1 = arith.extui %0 : i1 to i32
    %c0_i32_0 = arith.constant 0 : i32
    %2 = arith.cmpi ne, %1, %c0_i32_0 : i32
    scf.if %2 {
      %cst_19 = arith.constant 0.000000e+00 : f32
      %30 = vector.broadcast %cst_19 : f32 to vector<2x8x128xf32>
      %c0_20 = arith.constant 0 : index
      %c0_21 = arith.constant 0 : index
      %c0_22 = arith.constant 0 : index
      %31 = vector.load %arg3[%c0_20, %c0_21, %c0_22] : memref<2x8x128xf32, #tpu.memory_space<vmem>>, vector<2x8x128xf32>
      tpu.vector_store %arg3[%c0_20, %c0_21, %c0_22], %30 {strides = array<i32>} : memref<2x8x128xf32, #tpu.memory_space<vmem>>, vector<2x8x128xf32>,
    } else {
    }
    %c0 = arith.constant 0 : index
    %c0_1 = arith.constant 0 : index
    %3 = vector.load %arg1[%c0, %c0_1] : memref<16x128xf32, #tpu.memory_space<vmem>>, vector<16x128xf32>
    %c0_2 = arith.constant 0 : index
    %c0_3 = arith.constant 0 : index
    %4 = vector.load %arg2[%c0_2, %c0_3] : memref<16x128xf32, #tpu.memory_space<vmem>>, vector<16x128xf32>
    %cst = arith.constant 5.000000e-01 : f32
    %5 = vector.broadcast %cst : f32 to vector<16x128xf32>
    %6 = arith.mulf %5, %3 : vector<16x128xf32>
    %7 = math.tanh %6 : vector<16x128xf32>
    %cst_4 = arith.constant 1.000000e+00 : f32
    %8 = vector.broadcast %cst_4 : f32 to vector<16x128xf32>
    %9 = arith.addf %7, %8 : vector<16x128xf32>
    %cst_5 = arith.constant 5.000000e-01 : f32
    %10 = vector.broadcast %cst_5 : f32 to vector<16x128xf32>
    %11 = arith.mulf %10, %9 : vector<16x128xf32>
    %c0_6 = arith.constant 0 : index
    %c0_7 = arith.constant 0 : index
    %c0_8 = arith.constant 0 : index
    %12 = vector.load %arg3[%c0_6, %c0_7, %c0_8] : memref<2x8x128xf32, #tpu.memory_space<vmem>>, vector<1x8x128xf32>
    %13 = vector.shape_cast %12 : vector<1x8x128xf32> to vector<8x128xf32>
    %14 = arith.mulf %11, %4 : vector<16x128xf32>
    %15 = vector.shape_cast %14 : vector<16x128xf32> to vector<2x8x128xf32>
    %cst_9 = arith.constant dense<0.000000e+00> : vector<8x128xf32>
    %16 = vector.multi_reduction <add>, %15, %cst_9 [0] : vector<2x8x128xf32> to vector<8x128xf32>
    %17 = arith.addf %13, %16 : vector<8x128xf32>
    %c0_10 = arith.constant 0 : index
    %c0_11 = arith.constant 0 : index
    %c0_12 = arith.constant 0 : index
    %18 = vector.load %arg3[%c0_10, %c0_11, %c0_12] : memref<2x8x128xf32, #tpu.memory_space<vmem>>, vector<1x8x128xf32>
    %19 = vector.shape_cast %18 : vector<1x8x128xf32> to vector<8x128xf32>
    %20 = vector.shape_cast %17 : vector<8x128xf32> to vector<1x8x128xf32>
    tpu.vector_store %arg3[%c0_10, %c0_11, %c0_12], %20 {strides = array<i32>} : memref<2x8x128xf32, #tpu.memory_space<vmem>>, vector<1x8x128xf32>,
    %c1 = arith.constant 1 : index
    %c0_13 = arith.constant 0 : index
    %c0_14 = arith.constant 0 : index
    %21 = vector.load %arg3[%c1, %c0_13, %c0_14] : memref<2x8x128xf32, #tpu.memory_space<vmem>>, vector<1x8x128xf32>
    %22 = vector.shape_cast %21 : vector<1x8x128xf32> to vector<8x128xf32>
    %23 = arith.addf %11, %4 : vector<16x128xf32>
    %24 = vector.shape_cast %23 : vector<16x128xf32> to vector<2x8x128xf32>
    %cst_15 = arith.constant dense<0.000000e+00> : vector<8x128xf32>
    %25 = vector.multi_reduction <add>, %24, %cst_15 [0] : vector<2x8x128xf32> to vector<8x128xf32>
    %26 = arith.addf %22, %25 : vector<8x128xf32>
    %c1_16 = arith.constant 1 : index
    %c0_17 = arith.constant 0 : index
    %c0_18 = arith.constant 0 : index
    %27 = vector.load %arg3[%c1_16, %c0_17, %c0_18] : memref<2x8x128xf32, #tpu.memory_space<vmem>>, vector<1x8x128xf32>
    %28 = vector.shape_cast %27 : vector<1x8x128xf32> to vector<8x128xf32>
    %29 = vector.shape_cast %26 : vector<8x128xf32> to vector<1x8x128xf32>
    tpu.vector_store %arg3[%c1_16, %c0_17, %c0_18], %29 {strides = array<i32>} : memref<2x8x128xf32, #tpu.memory_space<vmem>>, vector<1x8x128xf32>,
    return
  }
  func.func @transform_0(%arg0: i32) -> (i32, i32) {
    %c0_i32 = arith.constant 0 : i32
    %c0_i32_0 = arith.constant 0 : i32
    return %arg0, %c0_i32 : i32, i32
  }
  func.func @transform_1(%arg0: i32) -> (i32, i32) {
    %c0_i32 = arith.constant 0 : i32
    %c0_i32_0 = arith.constant 0 : i32
    return %arg0, %c0_i32 : i32, i32
  }
  func.func @transform_2(%arg0: i32) -> (i32, i32, i32) {
    %c0_i32 = arith.constant 0 : i32
    %c0_i32_0 = arith.constant 0 : i32
    %c0_i32_1 = arith.constant 0 : i32
    %c0_i32_2 = arith.constant 0 : i32
    return %c0_i32, %c0_i32_0, %c0_i32_1 : i32, i32, i32
  }
}

</mosaic_0001>

<llo_original>
// kernel: dice_loss.1
$region0: #{dice_loss.1}
  #allocation0 [shape = 'u32[]', space=smem, size = 0x4, offset = 0x4, fixed_abs, tag = 'smem constant byte address 0x4 - core index']
  #allocation1 [shape = 'u32[72,128]{1,0:T(1,128)}', space=vmem, size = 0x9000, scoped, tag = 'internal scratch']
  %s0 = inlined_call_operand.vmem [shape: f32[16,128], index: 0, kind: input, shape index: {}]
  %s1 = inlined_call_operand.vmem [shape: f32[16,128], index: 1, kind: input, shape index: {}]
  %s2 = inlined_call_operand.vmem [shape: f32[2,8,128], index: 2, kind: output, shape index: {}]
  %s3 = sld [smem:[#allocation0]]
  $region22: #{dice_loss.1} parent=0
    _
  %s5 = ssub.s32 1, %s3
  %s6 = scalar_select 0, %s5, %s3
  // Predicated region
  $region2: #{dice_loss.1} parent=0 // pred_check
    _
  $region3: #{dice_loss.1} parent=0 // pred_check_branch
    %8 = sbr.rel (0) target = $region5
  $region4: #{dice_loss.1} parent=0 // pred_region
    _
  $region5: #{dice_loss.1} parent=0 // pred_fallthru
    _
  // Predicated region
  $region6: #{dice_loss.1} parent=0 // pred_check
    _
  $region7: #{dice_loss.1} parent=0 // pred_check_branch
    %10 = sbr.rel (0) target = $region9
  $region8: #{dice_loss.1} parent=0 // pred_region
    _
  $region9: #{dice_loss.1} parent=0 // pred_fallthru
    _
  %p11 = scmp.eq.s32.totalorder 0, 0
  // Predicated region
  $region10: #{dice_loss.1} parent=0 // pred_check
    %p12 = pneg %p11
  $region11: #{dice_loss.1} parent=0 // pred_check_branch
    %14 = sbr.rel (%p12) target = $region13
  $region12: #{dice_loss.1} parent=0 // pred_region
    %15 = vst [vmem:[%s2] sm:$0xff] 0.0
    %16 = vst [vmem:[%s2 + $0x8] sm:$0xff] 0.0
  $region13: #{dice_loss.1} parent=0 // pred_fallthru
    _
  %v17 = vld [vmem:[%s0] sm:$0xff]
  %v18 = vld [vmem:[%s0 + $0x8] sm:$0xff]
  %v19 = vld [vmem:[%s1] sm:$0xff]
  %v20 = vld [vmem:[%s1 + $0x8] sm:$0xff]
  %v21 = vmul.f32 %v17, 0.5
  %v22 = vmul.f32 %v18, 0.5
  %v23 = vtanh.pop %v21
  %v24 = vtanh.pop %v22
  %v25 = vadd.f32 %v23, 1.0
  %v26 = vadd.f32 %v24, 1.0
  %v27 = vmul.f32 %v25, 0.5
  %v28 = vmul.f32 %v26, 0.5
  %v29 = vld [vmem:[%s2] sm:$0xff]
  %v30 = vmul.f32 %v27, %v19
  %v31 = vmul.f32 %v28, %v20
  %v32 = vadd.f32 %v30, %v31
  %v33 = vadd.f32 %v29, %v32
  %34 = vst [vmem:[%s2] sm:$0xff] %v33
  %s35 = scalar_lea.vmem %s2, 8
  %v36 = vld [vmem:[%s35] sm:$0xff]
  %v37 = vadd.f32 %v27, %v19
  %v38 = vadd.f32 %v28, %v20
  %v39 = vadd.f32 %v37, %v38
  %v40 = vadd.f32 %v36, %v39
  %41 = vst [vmem:[%s35] sm:$0xff] %v40
  // Predicated region
  $region14: #{dice_loss.1} parent=0 // pred_check
    _
  $region15: #{dice_loss.1} parent=0 // pred_check_branch
    %43 = sbr.rel (0) target = $region17
  $region16: #{dice_loss.1} parent=0 // pred_region
    _
  $region17: #{dice_loss.1} parent=0 // pred_fallthru
    _
  // Predicated region
  $region18: #{dice_loss.1} parent=0 // pred_check
    _
  $region19: #{dice_loss.1} parent=0 // pred_check_branch
    %45 = sbr.rel (0) target = $region21
  $region20: #{dice_loss.1} parent=0 // pred_region
    _
  $region21: #{dice_loss.1} parent=0 // pred_fallthru
    _

</llo_original>
